<compile_context>
chip_gen: v7x
topology: tpu7x:2x2x1
jax: 0.10.0
libtpu: 0.0.40
codegen_flags: <defaults>
</compile_context>

<pallas_src>
import jax
import jax.numpy as jnp
import numpy as np
from jax.experimental import pallas as pl
from jax.experimental.pallas import tpu as pltpu

# ---------------------------------------------------------------------------
# Model configuration (small shapes, TPU-lane-padded)
# ---------------------------------------------------------------------------
BATCH = 2
NUM_TIMESTEPS = 5          # T (module default num_timesteps=5)
NUM_CLASSES = 15           # NC (module default num_classes=15)
C_IN = 4                   # dynamic feature channels
H_TCN = 32                 # TCN hidden width
KERNEL = 3                 # causal conv kernel size
EMB_DIM = 32               # global (ESM-like) embedding dim
TAIL_LEN = 20              # first / last 20 amino acids
VOCAB = 20                 # amino-acid vocabulary
H_STATIC = 64              # static MLP hidden width

LANE = 128
SUBLANE = 8


def _round_up(x, m):
    return (x + m - 1) // m * m


T_PAD = _round_up(NUM_TIMESTEPS, SUBLANE)
B_PAD = _round_up(BATCH, SUBLANE)
ROWS = BATCH * T_PAD                       # 16 rows: all samples in one block
H_PAD = _round_up(H_TCN, LANE)
NC_PAD = _round_up(NUM_CLASSES, LANE)
KC = KERNEL * C_IN                         # im2col channels = 12
KC_PAD = _round_up(KC, LANE)
FEAT_DIM = 2 * TAIL_LEN * VOCAB + EMB_DIM  # 832
FEAT_PAD = _round_up(FEAT_DIM, LANE)
HS_PAD = _round_up(H_STATIC, LANE)


def _pad_to(x, shape):
    return jnp.pad(x, [(0, t - s) for s, t in zip(x.shape, shape)])


# ---------------------------------------------------------------------------
# Fused kernel: static MLP + causal-conv(im2col) + pointwise + combination
# ---------------------------------------------------------------------------
def _fused_kernel(feat_ref, x_ref, w1_ref, b1_ref, w2_ref, b2_ref,
                  wstat_ref, bcomb_ref, wconv_ref, bconv_ref,
                  wpt_ref, bpt_ref, wdyn_ref, o_ref):
    mxu = w1_ref.dtype   # MXU operand dtype (f32 or bf16); accumulation is always f32

    # ----- static path (frozen): MLP + static half of the CombinationLayer -----
    feat = feat_ref[...].astype(mxu)                                       # (B_PAD, FEAT_PAD)
    hid = jnp.maximum(
        jnp.dot(feat, w1_ref[...], preferred_element_type=jnp.float32) + b1_ref[...], 0.0)
    logits = (jnp.dot(hid.astype(mxu), w2_ref[...],
                      preferred_element_type=jnp.float32) + b2_ref[...])
    # static half of the combination layer (+ b_comb, added exactly once here).
    static_bias = (jnp.dot(logits.astype(mxu), wstat_ref[...],
                           preferred_element_type=jnp.float32) + bcomb_ref[...])  # (B_PAD, NC_PAD)

    # ----- dynamic path: im2col causal conv -> ReLU -> pointwise conv -----
    x = x_ref[...].astype(mxu)                                             # (ROWS, KC_PAD)
    h = jnp.maximum(
        jnp.dot(x, wconv_ref[...], preferred_element_type=jnp.float32) + bconv_ref[...], 0.0)
    dyn = (jnp.dot(h.astype(mxu), wpt_ref[...],
                   preferred_element_type=jnp.float32) + bpt_ref[...])     # (ROWS, NC_PAD)

    # ----- combination epilogue: dyn @ W_dyn + per-sample static bias -----
    out = jnp.dot(dyn.astype(mxu), wdyn_ref[...], preferred_element_type=jnp.float32)
    sbias = jnp.concatenate(
        [jnp.broadcast_to(static_bias[b:b + 1, :], (T_PAD, NC_PAD)) for b in range(BATCH)],
        axis=0)                                                            # (ROWS, NC_PAD)
    o_ref[...] = (out + sbias).astype(o_ref.dtype)                         # single lane-dense store


# ---------------------------------------------------------------------------
# One-time weight preparation (outside the jitted forward)
# ---------------------------------------------------------------------------
def prepare_params(params, mxu_dtype=jnp.float32):
    """Pad every weight to 128 lanes, split w_comb, reshape biases, cast MXU operands."""
    w_dyn, w_stat = jnp.split(params["w_comb"], 2, axis=0)     # concat order [dynamic, static]
    w_conv_packed = params["w_conv"].reshape(KC, H_TCN)        # rows k*C_IN:(k+1)*C_IN = tap k

    def pw(a, shape):                                          # weight: pad + MXU dtype
        return _pad_to(a, shape).astype(mxu_dtype)

    def pb(a, shape):                                          # bias: pad, stays f32 (post-acc add)
        return _pad_to(a[None, :], shape).astype(jnp.float32)

    return {
        "w1": pw(params["w1"], (FEAT_PAD, HS_PAD)),   "b1": pb(params["b1"], (1, HS_PAD)),
        "w2": pw(params["w2"], (HS_PAD, NC_PAD)),     "b2": pb(params["b2"], (1, NC_PAD)),
        "w_stat": pw(w_stat, (NC_PAD, NC_PAD)),       "b_comb": pb(params["b_comb"], (1, NC_PAD)),
        "w_conv": pw(w_conv_packed, (KC_PAD, H_PAD)), "b_conv": pb(params["b_conv"], (1, H_PAD)),
        "w_point": pw(params["w_point"], (H_PAD, NC_PAD)),
        "b_point": pb(params["b_point"], (1, NC_PAD)),
        "w_dyn": pw(w_dyn, (NC_PAD, NC_PAD)),
    }


# ---------------------------------------------------------------------------
# Forward wrapper: one fused pallas_call, grid=(1,)
# ---------------------------------------------------------------------------
@jax.jit
def tcn_dynamic_forward(prepped, dynamic_data, global_embeddings, ind_start_seq,
                        ind_end_seq):
    B, _, T = dynamic_data.shape   # B == BATCH, T == NUM_TIMESTEPS (static for this kernel)

    # StaticLearnable=False -> frozen static MLP weights.
    static_w = {k: jax.lax.stop_gradient(prepped[k]) for k in ("w1", "b1", "w2", "b2")}

    # Static features: one-hot tails ++ ESM embedding  ->  (B_PAD, FEAT_PAD).
    oh_s = jax.nn.one_hot(ind_start_seq, VOCAB, dtype=jnp.float32).reshape(B, -1)
    oh_e = jax.nn.one_hot(ind_end_seq, VOCAB, dtype=jnp.float32).reshape(B, -1)
    feat = jnp.concatenate([oh_s, oh_e, global_embeddings], axis=-1)
    feat_pad = _pad_to(feat, (B_PAD, FEAT_PAD))

    # im2col for the causal K=3 conv: channels = [x[t], x[t-1], x[t-2]] (zero left-pad),
    # fused with the mandatory NCW->NWC transpose + pad-to-128 copy.
    x_nwc = jnp.transpose(dynamic_data, (0, 2, 1))                        # (B, T, C_IN)
    taps = [jnp.pad(x_nwc, ((0, 0), (k, 0), (0, 0)))[:, :T, :] for k in range(KERNEL)]
    x_col = jnp.concatenate(taps, axis=-1)                                # (B, T, K*C_IN)
    x_col = _pad_to(x_col, (B, T_PAD, KC_PAD)).reshape(ROWS, KC_PAD)      # (16, 128)

    out_pad = pl.pallas_call(
        _fused_kernel,
        out_shape=jax.ShapeDtypeStruct((ROWS, NC_PAD), jnp.float32),
        grid=(1,),
        in_specs=[
            pl.BlockSpec((B_PAD, FEAT_PAD), lambda i: (0, 0)),
            pl.BlockSpec((ROWS, KC_PAD), lambda i: (0, 0)),
            pl.BlockSpec((FEAT_PAD, HS_PAD), lambda i: (0, 0)),
            pl.BlockSpec((1, HS_PAD), lambda i: (0, 0)),
            pl.BlockSpec((HS_PAD, NC_PAD), lambda i: (0, 0)),
            pl.BlockSpec((1, NC_PAD), lambda i: (0, 0)),
            pl.BlockSpec((NC_PAD, NC_PAD), lambda i: (0, 0)),
            pl.BlockSpec((1, NC_PAD), lambda i: (0, 0)),
            pl.BlockSpec((KC_PAD, H_PAD), lambda i: (0, 0)),
            pl.BlockSpec((1, H_PAD), lambda i: (0, 0)),
            pl.BlockSpec((H_PAD, NC_PAD), lambda i: (0, 0)),
            pl.BlockSpec((1, NC_PAD), lambda i: (0, 0)),
            pl.BlockSpec((NC_PAD, NC_PAD), lambda i: (0, 0)),
        ],
        out_specs=pl.BlockSpec((ROWS, NC_PAD), lambda i: (0, 0)),
        compiler_params=pltpu.CompilerParams(dimension_semantics=("arbitrary",)),
    )(feat_pad, x_col,
      static_w["w1"], static_w["b1"], static_w["w2"], static_w["b2"],
      prepped["w_stat"], prepped["b_comb"],
      prepped["w_conv"], prepped["b_conv"],
      prepped["w_point"], prepped["b_point"], prepped["w_dyn"])

    # Module contract is (B, T, NC); keep (B, T_PAD, NC_PAD) instead if downstream
    # can consume the lane-dense padded slab (padded rows/lanes hold bias garbage).
    out = out_pad.reshape(B, T_PAD, NC_PAD)
    return out[:, :T, :NUM_CLASSES]


# ---------------------------------------------------------------------------
# Parameter init + pure-JAX reference for validation
# ---------------------------------------------------------------------------
def init_params(key):
    keys = jax.random.split(key, 10)

    def he(k, shape, fan_in):
        return jax.random.normal(k, shape, jnp.float32) * jnp.sqrt(2.0 / fan_in)

    def small(k, shape):
        return 0.1 * jax.random.normal(k, shape, jnp.float32)

    return {
        # Static model (frozen).
        "w1": he(keys[0], (FEAT_DIM, H_STATIC), FEAT_DIM),
        "b1": small(keys[1], (H_STATIC,)),
        "w2": he(keys[2], (H_STATIC, NUM_CLASSES), H_STATIC),
        "b2": small(keys[3], (NUM_CLASSES,)),
        # TCN temporal block.
        "w_conv": he(keys[4], (KERNEL, C_IN, H_TCN), KERNEL * C_IN),
        "b_conv": small(keys[5], (H_TCN,)),
        "w_point": he(keys[6], (H_TCN, NUM_CLASSES), H_TCN),
        "b_point": small(keys[7], (NUM_CLASSES,)),
        # CombinationLayer: Linear(2*NC -> NC), concat order = [dynamic, static].
        "w_comb": he(keys[8], (2 * NUM_CLASSES, NUM_CLASSES), 2 * NUM_CLASSES),
        "b_comb": small(keys[9], (NUM_CLASSES,)),
    }


def reference_forward(params, dynamic_data, global_embeddings, ind_start_seq,
                      ind_end_seq):
    P = jax.lax.Precision.HIGHEST
    B, _, T = dynamic_data.shape
    oh_s = jax.nn.one_hot(ind_start_seq, VOCAB, dtype=jnp.float32).reshape(B, -1)
    oh_e = jax.nn.one_hot(ind_end_seq, VOCAB, dtype=jnp.float32).reshape(B, -1)
    feat = jnp.concatenate([oh_s, oh_e, global_embeddings], axis=-1)
    hid = jax.nn.relu(jnp.dot(feat, params["w1"], precision=P) + params["b1"])
    static_out = jnp.dot(hid, params["w2"], precision=P) + params["b2"]   # (B, NC)

    x = jnp.transpose(dynamic_data, (0, 2, 1))                            # (B, T, C)
    h = jnp.zeros((B, T, H_TCN), jnp.float32)
    for k in range(KERNEL):
        x_shift = jnp.pad(x, ((0, 0), (k, 0), (0, 0)))[:, :T, :]          # causal shift
        h = h + jnp.einsum("btc,ch->bth", x_shift, params["w_conv"][k], precision=P)
    h = jax.nn.relu(h + params["b_conv"])
    dyn = jnp.einsum("bth,hn->btn", h, params["w_point"], precision=P) + params["b_point"]

    stat = jnp.broadcast_to(static_out[:, None, :], (B, T, NUM_CLASSES))
    combined = jnp.concatenate([dyn, stat], axis=-1)
    return jnp.einsum("btc,cn->btn", combined, params["w_comb"], precision=P) + params["b_comb"]


# ---------------------------------------------------------------------------
if __name__ == "__main__":
    key = jax.random.PRNGKey(0)
    k_param, k_dyn, k_emb, k_s, k_e = jax.random.split(key, 5)

    params = init_params(k_param)
    dynamic_data = jax.random.normal(k_dyn, (BATCH, C_IN, NUM_TIMESTEPS), jnp.float32)
    global_embeddings = jax.random.normal(k_emb, (BATCH, EMB_DIM), jnp.float32)
    ind_start_seq = jax.random.randint(k_s, (BATCH, TAIL_LEN), 0, VOCAB, jnp.int32)
    ind_end_seq = jax.random.randint(k_e, (BATCH, TAIL_LEN), 0, VOCAB, jnp.int32)

    ref = reference_forward(params, dynamic_data, global_embeddings,
                            ind_start_seq, ind_end_seq)

    # f32 MXU operands: tight tolerance.
    prepped_f32 = prepare_params(params, jnp.float32)
    out_f32 = tcn_dynamic_forward(prepped_f32, dynamic_data, global_embeddings,
                                  ind_start_seq, ind_end_seq)
    out_f32 = jax.block_until_ready(out_f32)
    assert out_f32.shape == (BATCH, NUM_TIMESTEPS, NUM_CLASSES)
    np.testing.assert_allclose(np.asarray(out_f32), np.asarray(ref), rtol=1e-3, atol=1e-3)

    # bf16 MXU operands (v5e/v6e lever), f32 accumulation: bf16-appropriate tolerance.
    prepped_bf16 = prepare_params(params, jnp.bfloat16)
    out_bf16 = tcn_dynamic_forward(prepped_bf16, dynamic_data, global_embeddings,
                                   ind_start_seq, ind_end_seq)
    out_bf16 = jax.block_until_ready(out_bf16)
    np.testing.assert_allclose(np.asarray(out_bf16), np.asarray(ref), rtol=2e-2, atol=2e-2)

    print("KERNEL_OK")
</pallas_src>

<mosaic_0001>
module attributes {stable_mosaic.version = 11 : i64} {
  func.func @_fused_kernel(%arg0: i32, %arg1: memref<8x896xf32, #tpu.memory_space<vmem>>, %arg2: memref<16x128xf32, #tpu.memory_space<vmem>>, %arg3: memref<896x128xf32, #tpu.memory_space<vmem>>, %arg4: memref<1x128xf32, #tpu.memory_space<vmem>>, %arg5: memref<128x128xf32, #tpu.memory_space<vmem>>, %arg6: memref<1x128xf32, #tpu.memory_space<vmem>>, %arg7: memref<128x128xf32, #tpu.memory_space<vmem>>, %arg8: memref<1x128xf32, #tpu.memory_space<vmem>>, %arg9: memref<128x128xf32, #tpu.memory_space<vmem>>, %arg10: memref<1x128xf32, #tpu.memory_space<vmem>>, %arg11: memref<128x128xf32, #tpu.memory_space<vmem>>, %arg12: memref<1x128xf32, #tpu.memory_space<vmem>>, %arg13: memref<128x128xf32, #tpu.memory_space<vmem>>, %arg14: memref<16x128xf32, #tpu.memory_space<vmem>>) attributes {dimension_semantics = [#tpu.dimension_semantics<arbitrary>], iteration_bounds = array<i64: 1>, scalar_prefetch = 0 : i64, scratch_operands = 0 : i64, tpu.core_type = #tpu.core_type<tc>, window_params = [{pipeline_mode = #tpu.pipeline_mode<synchronous>, transform_indices = @transform_0, window_bounds = array<i64: 8, 896>}, {pipeline_mode = #tpu.pipeline_mode<synchronous>, transform_indices = @transform_1, window_bounds = array<i64: 16, 128>}, {pipeline_mode = #tpu.pipeline_mode<synchronous>, transform_indices = @transform_2, window_bounds = array<i64: 896, 128>}, {pipeline_mode = #tpu.pipeline_mode<synchronous>, transform_indices = @transform_3, window_bounds = array<i64: 1, 128>}, {pipeline_mode = #tpu.pipeline_mode<synchronous>, transform_indices = @transform_4, window_bounds = array<i64: 128, 128>}, {pipeline_mode = #tpu.pipeline_mode<synchronous>, transform_indices = @transform_5, window_bounds = array<i64: 1, 128>}, {pipeline_mode = #tpu.pipeline_mode<synchronous>, transform_indices = @transform_6, window_bounds = array<i64: 128, 128>}, {pipeline_mode = #tpu.pipeline_mode<synchronous>, transform_indices = @transform_7, window_bounds = array<i64: 1, 128>}, {pipeline_mode = #tpu.pipeline_mode<synchronous>, transform_indices = @transform_8, window_bounds = array<i64: 128, 128>}, {pipeline_mode = #tpu.pipeline_mode<synchronous>, transform_indices = @transform_9, window_bounds = array<i64: 1, 128>}, {pipeline_mode = #tpu.pipeline_mode<synchronous>, transform_indices = @transform_10, window_bounds = array<i64: 128, 128>}, {pipeline_mode = #tpu.pipeline_mode<synchronous>, transform_indices = @transform_11, window_bounds = array<i64: 1, 128>}, {pipeline_mode = #tpu.pipeline_mode<synchronous>, transform_indices = @transform_12, window_bounds = array<i64: 128, 128>}, {pipeline_mode = #tpu.pipeline_mode<synchronous>, transform_indices = @transform_13, window_bounds = array<i64: 16, 128>}]} {
    %c0 = arith.constant 0 : index
    %c0_0 = arith.constant 0 : index
    %0 = vector.load %arg1[%c0, %c0_0] : memref<8x896xf32, #tpu.memory_space<vmem>>, vector<8x896xf32>
    %c0_1 = arith.constant 0 : index
    %c0_2 = arith.constant 0 : index
    %1 = vector.load %arg3[%c0_1, %c0_2] : memref<896x128xf32, #tpu.memory_space<vmem>>, vector<896x128xf32>
    %cst = arith.constant dense<0.000000e+00> : vector<8x128xf32>
    %2 = tpu.matmul %0, %1, %cst {dimension_numbers = #tpu.dot_dimension_numbers<[1], [0], [0], [1], [0, 0, 1, 1], [], []>} : vector<8x896xf32>, vector<896x128xf32>, vector<8x128xf32> -> vector<8x128xf32>
    %c0_3 = arith.constant 0 : index
    %c0_4 = arith.constant 0 : index
    %3 = vector.load %arg4[%c0_3, %c0_4] : memref<1x128xf32, #tpu.memory_space<vmem>>, vector<1x128xf32>
    %4 = vector.broadcast %3 : vector<1x128xf32> to vector<8x128xf32>
    %5 = arith.addf %2, %4 : vector<8x128xf32>
    %cst_5 = arith.constant 0.000000e+00 : f32
    %6 = vector.broadcast %cst_5 : f32 to vector<8x128xf32>
    %7 = arith.maximumf %5, %6 : vector<8x128xf32>
    %c0_6 = arith.constant 0 : index
    %c0_7 = arith.constant 0 : index
    %8 = vector.load %arg5[%c0_6, %c0_7] : memref<128x128xf32, #tpu.memory_space<vmem>>, vector<128x128xf32>
    %cst_8 = arith.constant dense<0.000000e+00> : vector<8x128xf32>
    %9 = tpu.matmul %7, %8, %cst_8 {dimension_numbers = #tpu.dot_dimension_numbers<[1], [0], [0], [1], [0, 0, 1, 1], [], []>} : vector<8x128xf32>, vector<128x128xf32>, vector<8x128xf32> -> vector<8x128xf32>
    %c0_9 = arith.constant 0 : index
    %c0_10 = arith.constant 0 : index
    %10 = vector.load %arg6[%c0_9, %c0_10] : memref<1x128xf32, #tpu.memory_space<vmem>>, vector<1x128xf32>
    %11 = vector.broadcast %10 : vector<1x128xf32> to vector<8x128xf32>
    %12 = arith.addf %9, %11 : vector<8x128xf32>
    %c0_11 = arith.constant 0 : index
    %c0_12 = arith.constant 0 : index
    %13 = vector.load %arg7[%c0_11, %c0_12] : memref<128x128xf32, #tpu.memory_space<vmem>>, vector<128x128xf32>
    %cst_13 = arith.constant dense<0.000000e+00> : vector<8x128xf32>
    %14 = tpu.matmul %12, %13, %cst_13 {dimension_numbers = #tpu.dot_dimension_numbers<[1], [0], [0], [1], [0, 0, 1, 1], [], []>} : vector<8x128xf32>, vector<128x128xf32>, vector<8x128xf32> -> vector<8x128xf32>
    %c0_14 = arith.constant 0 : index
    %c0_15 = arith.constant 0 : index
    %15 = vector.load %arg8[%c0_14, %c0_15] : memref<1x128xf32, #tpu.memory_space<vmem>>, vector<1x128xf32>
    %16 = vector.broadcast %15 : vector<1x128xf32> to vector<8x128xf32>
    %17 = arith.addf %14, %16 : vector<8x128xf32>
    %c0_16 = arith.constant 0 : index
    %c0_17 = arith.constant 0 : index
    %18 = vector.load %arg2[%c0_16, %c0_17] : memref<16x128xf32, #tpu.memory_space<vmem>>, vector<16x128xf32>
    %c0_18 = arith.constant 0 : index
    %c0_19 = arith.constant 0 : index
    %19 = vector.load %arg9[%c0_18, %c0_19] : memref<128x128xf32, #tpu.memory_space<vmem>>, vector<128x128xf32>
    %cst_20 = arith.constant dense<0.000000e+00> : vector<16x128xf32>
    %20 = tpu.matmul %18, %19, %cst_20 {dimension_numbers = #tpu.dot_dimension_numbers<[1], [0], [0], [1], [0, 0, 1, 1], [], []>} : vector<16x128xf32>, vector<128x128xf32>, vector<16x128xf32> -> vector<16x128xf32>
    %c0_21 = arith.constant 0 : index
    %c0_22 = arith.constant 0 : index
    %21 = vector.load %arg10[%c0_21, %c0_22] : memref<1x128xf32, #tpu.memory_space<vmem>>, vector<1x128xf32>
    %22 = vector.broadcast %21 : vector<1x128xf32> to vector<16x128xf32>
    %23 = arith.addf %20, %22 : vector<16x128xf32>
    %cst_23 = arith.constant 0.000000e+00 : f32
    %24 = vector.broadcast %cst_23 : f32 to vector<16x128xf32>
    %25 = arith.maximumf %23, %24 : vector<16x128xf32>
    %c0_24 = arith.constant 0 : index
    %c0_25 = arith.constant 0 : index
    %26 = vector.load %arg11[%c0_24, %c0_25] : memref<128x128xf32, #tpu.memory_space<vmem>>, vector<128x128xf32>
    %cst_26 = arith.constant dense<0.000000e+00> : vector<16x128xf32>
    %27 = tpu.matmul %25, %26, %cst_26 {dimension_numbers = #tpu.dot_dimension_numbers<[1], [0], [0], [1], [0, 0, 1, 1], [], []>} : vector<16x128xf32>, vector<128x128xf32>, vector<16x128xf32> -> vector<16x128xf32>
    %c0_27 = arith.constant 0 : index
    %c0_28 = arith.constant 0 : index
    %28 = vector.load %arg12[%c0_27, %c0_28] : memref<1x128xf32, #tpu.memory_space<vmem>>, vector<1x128xf32>
    %29 = vector.broadcast %28 : vector<1x128xf32> to vector<16x128xf32>
    %30 = arith.addf %27, %29 : vector<16x128xf32>
    %c0_29 = arith.constant 0 : index
    %c0_30 = arith.constant 0 : index
    %31 = vector.load %arg13[%c0_29, %c0_30] : memref<128x128xf32, #tpu.memory_space<vmem>>, vector<128x128xf32>
    %cst_31 = arith.constant dense<0.000000e+00> : vector<16x128xf32>
    %32 = tpu.matmul %30, %31, %cst_31 {dimension_numbers = #tpu.dot_dimension_numbers<[1], [0], [0], [1], [0, 0, 1, 1], [], []>} : vector<16x128xf32>, vector<128x128xf32>, vector<16x128xf32> -> vector<16x128xf32>
    %33 = vector.extract_strided_slice %17 {offsets = [0, 0], sizes = [1, 128], strides = [1, 1]} : vector<8x128xf32> to vector<1x128xf32>
    %34 = vector.shape_cast %33 : vector<1x128xf32> to vector<1x128xf32>
    %35 = vector.broadcast %34 : vector<1x128xf32> to vector<8x128xf32>
    %36 = vector.extract_strided_slice %17 {offsets = [1, 0], sizes = [1, 128], strides = [1, 1]} : vector<8x128xf32> to vector<1x128xf32>
    %37 = vector.shape_cast %36 : vector<1x128xf32> to vector<1x128xf32>
    %38 = vector.broadcast %37 : vector<1x128xf32> to vector<8x128xf32>
    %39 = tpu.concatenate %35, %38 in 0 : vector<8x128xf32>, vector<8x128xf32> -> vector<16x128xf32>
    %40 = arith.addf %32, %39 : vector<16x128xf32>
    %c0_32 = arith.constant 0 : index
    %c0_33 = arith.constant 0 : index
    %41 = vector.load %arg14[%c0_32, %c0_33] : memref<16x128xf32, #tpu.memory_space<vmem>>, vector<16x128xf32>
    tpu.vector_store %arg14[%c0_32, %c0_33], %40 {strides = array<i32>} : memref<16x128xf32, #tpu.memory_space<vmem>>, vector<16x128xf32>,
    return
  }
  func.func @transform_0(%arg0: i32) -> (i32, i32) {
    %c0_i32 = arith.constant 0 : i32
    %c0_i32_0 = arith.constant 0 : i32
    %c0_i32_1 = arith.constant 0 : i32
    return %c0_i32, %c0_i32_0 : i32, i32
  }
  func.func @transform_1(%arg0: i32) -> (i32, i32) {
    %c0_i32 = arith.constant 0 : i32
    %c0_i32_0 = arith.constant 0 : i32
    %c0_i32_1 = arith.constant 0 : i32
    return %c0_i32, %c0_i32_0 : i32, i32
  }
  func.func @transform_2(%arg0: i32) -> (i32, i32) {
    %c0_i32 = arith.constant 0 : i32
    %c0_i32_0 = arith.constant 0 : i32
    %c0_i32_1 = arith.constant 0 : i32
    return %c0_i32, %c0_i32_0 : i32, i32
  }
  func.func @transform_3(%arg0: i32) -> (i32, i32) {
    %c0_i32 = arith.constant 0 : i32
    %c0_i32_0 = arith.constant 0 : i32
    %c0_i32_1 = arith.constant 0 : i32
    return %c0_i32, %c0_i32_0 : i32, i32
  }
  func.func @transform_4(%arg0: i32) -> (i32, i32) {
    %c0_i32 = arith.constant 0 : i32
    %c0_i32_0 = arith.constant 0 : i32
    %c0_i32_1 = arith.constant 0 : i32
    return %c0_i32, %c0_i32_0 : i32, i32
  }
  func.func @transform_5(%arg0: i32) -> (i32, i32) {
    %c0_i32 = arith.constant 0 : i32
    %c0_i32_0 = arith.constant 0 : i32
    %c0_i32_1 = arith.constant 0 : i32
    return %c0_i32, %c0_i32_0 : i32, i32
  }
  func.func @transform_6(%arg0: i32) -> (i32, i32) {
    %c0_i32 = arith.constant 0 : i32
    %c0_i32_0 = arith.constant 0 : i32
    %c0_i32_1 = arith.constant 0 : i32
    return %c0_i32, %c0_i32_0 : i32, i32
  }
  func.func @transform_7(%arg0: i32) -> (i32, i32) {
    %c0_i32 = arith.constant 0 : i32
    %c0_i32_0 = arith.constant 0 : i32
    %c0_i32_1 = arith.constant 0 : i32
    return %c0_i32, %c0_i32_0 : i32, i32
  }
  func.func @transform_8(%arg0: i32) -> (i32, i32) {
    %c0_i32 = arith.constant 0 : i32
    %c0_i32_0 = arith.constant 0 : i32
    %c0_i32_1 = arith.constant 0 : i32
    return %c0_i32, %c0_i32_0 : i32, i32
  }
  func.func @transform_9(%arg0: i32) -> (i32, i32) {
    %c0_i32 = arith.constant 0 : i32
    %c0_i32_0 = arith.constant 0 : i32
    %c0_i32_1 = arith.constant 0 : i32
    return %c0_i32, %c0_i32_0 : i32, i32
  }
  func.func @transform_10(%arg0: i32) -> (i32, i32) {
    %c0_i32 = arith.constant 0 : i32
    %c0_i32_0 = arith.constant 0 : i32
    %c0_i32_1 = arith.constant 0 : i32
    return %c0_i32, %c0_i32_0 : i32, i32
  }
  func.func @transform_11(%arg0: i32) -> (i32, i32) {
    %c0_i32 = arith.constant 0 : i32
    %c0_i32_0 = arith.constant 0 : i32
    %c0_i32_1 = arith.constant 0 : i32
    return %c0_i32, %c0_i32_0 : i32, i32
  }
  func.func @transform_12(%arg0: i32) -> (i32, i32) {
    %c0_i32 = arith.constant 0 : i32
    %c0_i32_0 = arith.constant 0 : i32
    %c0_i32_1 = arith.constant 0 : i32
    return %c0_i32, %c0_i32_0 : i32, i32
  }
  func.func @transform_13(%arg0: i32) -> (i32, i32) {
    %c0_i32 = arith.constant 0 : i32
    %c0_i32_0 = arith.constant 0 : i32
    %c0_i32_1 = arith.constant 0 : i32
    return %c0_i32, %c0_i32_0 : i32, i32
  }
}

</mosaic_0001>

<llo_original>
// kernel: tcn_dynamic_forward.1
$region0: #{tcn_dynamic_forward.1}
  #allocation0 [shape = 'u32[]', space=smem, size = 0x4, offset = 0x4, fixed_abs, tag = 'smem constant byte address 0x4 - core index']
  #allocation1 [shape = 'u32[144,128]{1,0:T(1,128)}', space=vmem, size = 0x12000, scoped, tag = 'internal scratch']
  %s0 = inlined_call_operand.vmem [shape: f32[8,896], index: 0, kind: input, shape index: {}]
  %s1 = inlined_call_operand.vmem [shape: f32[16,128], index: 1, kind: input, shape index: {}]
  %s2 = inlined_call_operand.hbm [shape: f32[896,128], index: 2, kind: input, shape index: {}]
  %s3 = inlined_call_operand.vmem [shape: f32[1,128], index: 3, kind: input, shape index: {}]
  %s4 = inlined_call_operand.vmem [shape: f32[128,128], index: 4, kind: input, shape index: {}]
  %s5 = inlined_call_operand.vmem [shape: f32[1,128], index: 5, kind: input, shape index: {}]
  %s6 = inlined_call_operand.vmem [shape: f32[128,128], index: 6, kind: input, shape index: {}]
  %s7 = inlined_call_operand.vmem [shape: f32[1,128], index: 7, kind: input, shape index: {}]
  %s8 = inlined_call_operand.vmem [shape: f32[128,128], index: 8, kind: input, shape index: {}]
  %s9 = inlined_call_operand.vmem [shape: f32[1,128], index: 9, kind: input, shape index: {}]
  %s10 = inlined_call_operand.vmem [shape: f32[128,128], index: 10, kind: input, shape index: {}]
  %s11 = inlined_call_operand.vmem [shape: f32[1,128], index: 11, kind: input, shape index: {}]
  %s12 = inlined_call_operand.hbm [shape: f32[128,128], index: 12, kind: input, shape index: {}]
  %s13 = inlined_call_operand.vmem [shape: f32[16,128], index: 13, kind: output, shape index: {}]
  %s14 = sld [smem:[#allocation0]]
  $region70: #{tcn_dynamic_forward.1} parent=0
    _
  %s16 = ssub.s32 1, %s14
  %s17 = scalar_select 0, %s16, %s14
  $region1: #{tcn_dynamic_forward.1} parent=0
    #allocation2 [shape = 'u8[458752]{0}', space=vmem, size = 0x70000, scoped, tag = 'input window, operand 2, single buffered']
    #allocation3 [shape = 's32[1]{0}', space=sflag, size = 0x4, scoped, tag = 'scoped memory for tcn_dynamic_forward.1']
    #allocation4 [shape = 'u8[65536]{0}', space=vmem, size = 0x10000, scoped, tag = 'input window, operand 12, single buffered']
    #allocation5 [shape = 's32[1]{0}', space=sflag, size = 0x4, scoped, tag = 'scoped memory for tcn_dynamic_forward.1']
    %18 = vsyncpa [#allocation3], 0
    %19 = vsyncpa [#allocation5], 0
    // Predicated region
    $region2: #{tcn_dynamic_forward.1} parent=1 // pred_check
      _
    $region3: #{tcn_dynamic_forward.1} parent=1 // pred_check_branch
      %21 = sbr.rel (0) target = $region5
    $region4: #{tcn_dynamic_forward.1} parent=1 // pred_region
      _
    $region5: #{tcn_dynamic_forward.1} parent=1 // pred_fallthru
      _
    // Predicated region
    $region6: #{tcn_dynamic_forward.1} parent=1 // pred_check
      _
    $region7: #{tcn_dynamic_forward.1} parent=1 // pred_check_branch
      %23 = sbr.rel (0) target = $region9
    $region8: #{tcn_dynamic_forward.1} parent=1 // pred_region
      _
    $region9: #{tcn_dynamic_forward.1} parent=1 // pred_fallthru
      _
    // Predicated region
    $region10: #{tcn_dynamic_forward.1} parent=1 // pred_check
      _
    $region11: #{tcn_dynamic_forward.1} parent=1 // pred_check_branch
      %25 = sbr.rel (0) target = $region13
    $region12: #{tcn_dynamic_forward.1} parent=1 // pred_region
      %s27 = ssub.s32 14336, 14336
      %28 = vsyncadd [#allocation3], %s27
      %s29 = sshll.u32 [#allocation2], 4
      %s30 = int_to_ptr.vmem [resolvable:$true] %s29
      %35 = dma.hbm_to_vmem [thread:$0]  %s2, 14336, %s30, [#allocation3], 128, 128, 8
    $region13: #{tcn_dynamic_forward.1} parent=1 // pred_fallthru
      _
    // Predicated region
    $region14: #{tcn_dynamic_forward.1} parent=1 // pred_check
      _
    $region15: #{tcn_dynamic_forward.1} parent=1 // pred_check_branch
      %37 = sbr.rel (0) target = $region17
    $region16: #{tcn_dynamic_forward.1} parent=1 // pred_region
      _
    $region17: #{tcn_dynamic_forward.1} parent=1 // pred_fallthru
      _
    // Predicated region
    $region18: #{tcn_dynamic_forward.1} parent=1 // pred_check
      _
    $region19: #{tcn_dynamic_forward.1} parent=1 // pred_check_branch
      %39 = sbr.rel (0) target = $region21
    $region20: #{tcn_dynamic_forward.1} parent=1 // pred_region
      _
    $region21: #{tcn_dynamic_forward.1} parent=1 // pred_fallthru
      _
    // Predicated region
    $region22: #{tcn_dynamic_forward.1} parent=1 // pred_check
      _
    $region23: #{tcn_dynamic_forward.1} parent=1 // pred_check_branch
      %41 = sbr.rel (0) target = $region25
    $region24: #{tcn_dynamic_forward.1} parent=1 // pred_region
      _
    $region25: #{tcn_dynamic_forward.1} parent=1 // pred_fallthru
      _
    // Predicated region
    $region26: #{tcn_dynamic_forward.1} parent=1 // pred_check
      _
    $region27: #{tcn_dynamic_forward.1} parent=1 // pred_check_branch
      %43 = sbr.rel (0) target = $region29
    $region28: #{tcn_dynamic_forward.1} parent=1 // pred_region
      _
    $region29: #{tcn_dynamic_forward.1} parent=1 // pred_fallthru
      _
    // Predicated region
    $region30: #{tcn_dynamic_forward.1} parent=1 // pred_check
      _
    $region31: #{tcn_dynamic_forward.1} parent=1 // pred_check_branch
      %45 = sbr.rel (0) target = $region33
    $region32: #{tcn_dynamic_forward.1} parent=1 // pred_region
      _
    $region33: #{tcn_dynamic_forward.1} parent=1 // pred_fallthru
      _
    // Predicated region
    $region34: #{tcn_dynamic_forward.1} parent=1 // pred_check
      _
    $region35: #{tcn_dynamic_forward.1} parent=1 // pred_check_branch
      %47 = sbr.rel (0) target = $region37
    $region36: #{tcn_dynamic_forward.1} parent=1 // pred_region
      _
    $region37: #{tcn_dynamic_forward.1} parent=1 // pred_fallthru
      _
    // Predicated region
    $region38: #{tcn_dynamic_forward.1} parent=1 // pred_check
      _
    $region39: #{tcn_dynamic_forward.1} parent=1 // pred_check_branch
      %49 = sbr.rel (0) target = $region41
    $region40: #{tcn_dynamic_forward.1} parent=1 // pred_region
      _
    $region41: #{tcn_dynamic_forward.1} parent=1 // pred_fallthru
      _
    // Predicated region
    $region42: #{tcn_dynamic_forward.1} parent=1 // pred_check
      _
    $region43: #{tcn_dynamic_forward.1} parent=1 // pred_check_branch
      %51 = sbr.rel (0) target = $region45
    $region44: #{tcn_dynamic_forward.1} parent=1 // pred_region
      _
    $region45: #{tcn_dynamic_forward.1} parent=1 // pred_fallthru
      _
    // Predicated region
    $region46: #{tcn_dynamic_forward.1} parent=1 // pred_check
      _
    $region47: #{tcn_dynamic_forward.1} parent=1 // pred_check_branch
      %53 = sbr.rel (0) target = $region49
    $region48: #{tcn_dynamic_forward.1} parent=1 // pred_region
      _
    $region49: #{tcn_dynamic_forward.1} parent=1 // pred_fallthru
      _
    // Predicated region
    $region50: #{tcn_dynamic_forward.1} parent=1 // pred_check
      _
    $region51: #{tcn_dynamic_forward.1} parent=1 // pred_check_branch
      %55 = sbr.rel (0) target = $region53
    $region52: #{tcn_dynamic_forward.1} parent=1 // pred_region
      %s57 = ssub.s32 2048, 2048
      %58 = vsyncadd [#allocation5], %s57
      %s59 = sshll.u32 [#allocation4], 4
      %s60 = int_to_ptr.vmem [resolvable:$true] %s59
      %65 = dma.hbm_to_vmem [thread:$0]  %s12, 2048, %s60, [#allocation5], 128, 128, 8
    $region53: #{tcn_dynamic_forward.1} parent=1 // pred_fallthru
      _
    // Predicated region
    $region54: #{tcn_dynamic_forward.1} parent=1 // pred_check
      _
    $region55: #{tcn_dynamic_forward.1} parent=1 // pred_check_branch
      %67 = sbr.rel (0) target = $region57
    $region56: #{tcn_dynamic_forward.1} parent=1 // pred_region
      %68 = dma.done [#allocation3], 14336
    $region57: #{tcn_dynamic_forward.1} parent=1 // pred_fallthru
      _
    // Predicated region
    $region58: #{tcn_dynamic_forward.1} parent=1 // pred_check
      _
    $region59: #{tcn_dynamic_forward.1} parent=1 // pred_check_branch
      %70 = sbr.rel (0) target = $region61
    $region60: #{tcn_dynamic_forward.1} parent=1 // pred_region
      %71 = dma.done [#allocation5], 2048
    $region61: #{tcn_dynamic_forward.1} parent=1 // pred_fallthru
      _
    %v72 = vld [vmem:[%s0] sm:$0xff]
    %v73 = vld [vmem:[%s0 + $0x8] sm:$0xff]
    %v74 = vld [vmem:[%s0 + $0x10] sm:$0xff]
    %v75 = vld [vmem:[%s0 + $0x18] sm:$0xff]
    %v76 = vld [vmem:[%s0 + $0x20] sm:$0xff]
    %v77 = vld [vmem:[%s0 + $0x28] sm:$0xff]
    %v78 = vld [vmem:[%s0 + $0x30] sm:$0xff]
    %v79 = vld [vmem:[#allocation2] sm:$0xff]
    %v80 = vld [vmem:[#allocation2 + $0x8] sm:$0xff]
    %v81 = vld [vmem:[#allocation2 + $0x10] sm:$0xff]
    %v82 = vld [vmem:[#allocation2 + $0x18] sm:$0xff]
    %v83 = vld [vmem:[#allocation2 + $0x20] sm:$0xff]
    %v84 = vld [vmem:[#allocation2 + $0x28] sm:$0xff]
    %v85 = vld [vmem:[#allocation2 + $0x30] sm:$0xff]
    %v86 = vld [vmem:[#allocation2 + $0x38] sm:$0xff]
    %v87 = vld [vmem:[#allocation2 + $0x40] sm:$0xff]
    %v88 = vld [vmem:[#allocation2 + $0x48] sm:$0xff]
    %v89 = vld [vmem:[#allocation2 + $0x50] sm:$0xff]
    %v90 = vld [vmem:[#allocation2 + $0x58] sm:$0xff]
    %v91 = vld [vmem:[#allocation2 + $0x60] sm:$0xff]
    %v92 = vld [vmem:[#allocation2 + $0x68] sm:$0xff]
    %v93 = vld [vmem:[#allocation2 + $0x70] sm:$0xff]
    %v94 = vld [vmem:[#allocation2 + $0x78] sm:$0xff]
    %v95 = vld [vmem:[#allocation2 + $0x80] sm:$0xff]
    %v96 = vld [vmem:[#allocation2 + $0x88] sm:$0xff]
    %v97 = vld [vmem:[#allocation2 + $0x90] sm:$0xff]
    %v98 = vld [vmem:[#allocation2 + $0x98] sm:$0xff]
    %v99 = vld [vmem:[#allocation2 + $0xa0] sm:$0xff]
    %v100 = vld [vmem:[#allocation2 + $0xa8] sm:$0xff]
    %v101 = vld [vmem:[#allocation2 + $0xb0] sm:$0xff]
    %v102 = vld [vmem:[#allocation2 + $0xb8] sm:$0xff]
    %v103 = vld [vmem:[#allocation2 + $0xc0] sm:$0xff]
    %v104 = vld [vmem:[#allocation2 + $0xc8] sm:$0xff]
    %v105 = vld [vmem:[#allocation2 + $0xd0] sm:$0xff]
    %v106 = vld [vmem:[#allocation2 + $0xd8] sm:$0xff]
    %v107 = vld [vmem:[#allocation2 + $0xe0] sm:$0xff]
    %v108 = vld [vmem:[#allocation2 + $0xe8] sm:$0xff]
    %v109 = vld [vmem:[#allocation2 + $0xf0] sm:$0xff]
    %v110 = vld [vmem:[#allocation2 + $0xf8] sm:$0xff]
    %v111 = vld [vmem:[#allocation2 + $0x100] sm:$0xff]
    %v112 = vld [vmem:[#allocation2 + $0x108] sm:$0xff]
    %v113 = vld [vmem:[#allocation2 + $0x110] sm:$0xff]
    %v114 = vld [vmem:[#allocation2 + $0x118] sm:$0xff]
    %v115 = vld [vmem:[#allocation2 + $0x120] sm:$0xff]
    %v116 = vld [vmem:[#allocation2 + $0x128] sm:$0xff]
    %v117 = vld [vmem:[#allocation2 + $0x130] sm:$0xff]
    %v118 = vld [vmem:[#allocation2 + $0x138] sm:$0xff]
    %v119 = vld [vmem:[#allocation2 + $0x140] sm:$0xff]
    %v120 = vld [vmem:[#allocation2 + $0x148] sm:$0xff]
    %v121 = vld [vmem:[#allocation2 + $0x150] sm:$0xff]
    %v122 = vld [vmem:[#allocation2 + $0x158] sm:$0xff]
    %v123 = vld [vmem:[#allocation2 + $0x160] sm:$0xff]
    %v124 = vld [vmem:[#allocation2 + $0x168] sm:$0xff]
    %v125 = vld [vmem:[#allocation2 + $0x170] sm:$0xff]
    %v126 = vld [vmem:[#allocation2 + $0x178] sm:$0xff]
    %v127 = vld [vmem:[#allocation2 + $0x180] sm:$0xff]
    %v128 = vld [vmem:[#allocation2 + $0x188] sm:$0xff]
    %v129 = vld [vmem:[#allocation2 + $0x190] sm:$0xff]
    %v130 = vld [vmem:[#allocation2 + $0x198] sm:$0xff]
    %v131 = vld [vmem:[#allocation2 + $0x1a0] sm:$0xff]
    %v132 = vld [vmem:[#allocation2 + $0x1a8] sm:$0xff]
    %v133 = vld [vmem:[#allocation2 + $0x1b0] sm:$0xff]
    %v134 = vld [vmem:[#allocation2 + $0x1b8] sm:$0xff]
    %v135 = vld [vmem:[#allocation2 + $0x1c0] sm:$0xff]
    %v136 = vld [vmem:[#allocation2 + $0x1c8] sm:$0xff]
    %v137 = vld [vmem:[#allocation2 + $0x1d0] sm:$0xff]
    %v138 = vld [vmem:[#allocation2 + $0x1d8] sm:$0xff]
    %v139 = vld [vmem:[#allocation2 + $0x1e0] sm:$0xff]
    %v140 = vld [vmem:[#allocation2 + $0x1e8] sm:$0xff]
    %v141 = vld [vmem:[#allocation2 + $0x1f0] sm:$0xff]
    %v142 = vld [vmem:[#allocation2 + $0x1f8] sm:$0xff]
    %v143 = vld [vmem:[#allocation2 + $0x200] sm:$0xff]
    %v144 = vld [vmem:[#allocation2 + $0x208] sm:$0xff]
    %v145 = vld [vmem:[#allocation2 + $0x210] sm:$0xff]
    %v146 = vld [vmem:[#allocation2 + $0x218] sm:$0xff]
    %v147 = vld [vmem:[#allocation2 + $0x220] sm:$0xff]
    %v148 = vld [vmem:[#allocation2 + $0x228] sm:$0xff]
    %v149 = vld [vmem:[#allocation2 + $0x230] sm:$0xff]
    %v150 = vld [vmem:[#allocation2 + $0x238] sm:$0xff]
    %v151 = vld [vmem:[#allocation2 + $0x240] sm:$0xff]
    %v152 = vld [vmem:[#allocation2 + $0x248] sm:$0xff]
    %v153 = vld [vmem:[#allocation2 + $0x250] sm:$0xff]
    %v154 = vld [vmem:[#allocation2 + $0x258] sm:$0xff]
    %v155 = vld [vmem:[#allocation2 + $0x260] sm:$0xff]
    %v156 = vld [vmem:[#allocation2 + $0x268] sm:$0xff]
    %v157 = vld [vmem:[#allocation2 + $0x270] sm:$0xff]
    %v158 = vld [vmem:[#allocation2 + $0x278] sm:$0xff]
    %v159 = vld [vmem:[#allocation2 + $0x280] sm:$0xff]
    %v160 = vld [vmem:[#allocation2 + $0x288] sm:$0xff]
    %v161 = vld [vmem:[#allocation2 + $0x290] sm:$0xff]
    %v162 = vld [vmem:[#allocation2 + $0x298] sm:$0xff]
    %v163 = vld [vmem:[#allocation2 + $0x2a0] sm:$0xff]
    %v164 = vld [vmem:[#allocation2 + $0x2a8] sm:$0xff]
    %v165 = vld [vmem:[#allocation2 + $0x2b0] sm:$0xff]
    %v166 = vld [vmem:[#allocation2 + $0x2b8] sm:$0xff]
    %v167 = vld [vmem:[#allocation2 + $0x2c0] sm:$0xff]
    %v168 = vld [vmem:[#allocation2 + $0x2c8] sm:$0xff]
    %v169 = vld [vmem:[#allocation2 + $0x2d0] sm:$0xff]
    %v170 = vld [vmem:[#allocation2 + $0x2d8] sm:$0xff]
    %v171 = vld [vmem:[#allocation2 + $0x2e0] sm:$0xff]
    %v172 = vld [vmem:[#allocation2 + $0x2e8] sm:$0xff]
    %v173 = vld [vmem:[#allocation2 + $0x2f0] sm:$0xff]
    %v174 = vld [vmem:[#allocation2 + $0x2f8] sm:$0xff]
    %v175 = vld [vmem:[#allocation2 + $0x300] sm:$0xff]
    %v176 = vld [vmem:[#allocation2 + $0x308] sm:$0xff]
    %v177 = vld [vmem:[#allocation2 + $0x310] sm:$0xff]
    %v178 = vld [vmem:[#allocation2 + $0x318] sm:$0xff]
    %v179 = vld [vmem:[#allocation2 + $0x320] sm:$0xff]
    %v180 = vld [vmem:[#allocation2 + $0x328] sm:$0xff]
    %v181 = vld [vmem:[#allocation2 + $0x330] sm:$0xff]
    %v182 = vld [vmem:[#allocation2 + $0x338] sm:$0xff]
    %v183 = vld [vmem:[#allocation2 + $0x340] sm:$0xff]
    %v184 = vld [vmem:[#allocation2 + $0x348] sm:$0xff]
    %v185 = vld [vmem:[#allocation2 + $0x350] sm:$0xff]
    %v186 = vld [vmem:[#allocation2 + $0x358] sm:$0xff]
    %v187 = vld [vmem:[#allocation2 + $0x360] sm:$0xff]
    %v188 = vld [vmem:[#allocation2 + $0x368] sm:$0xff]
    %v189 = vld [vmem:[#allocation2 + $0x370] sm:$0xff]
    %v190 = vld [vmem:[#allocation2 + $0x378] sm:$0xff]
    %v191 = vld [vmem:[%s3] sm:$0x1]
    %v193 = vlaneseq
    %v194 = vshrl.u32 %v193, 7
    %v195 = vsub.s32 0, %v194
    %v196 = vrot.slane %v191, %v195
    %198 = vmatprep.subr.mxu0 0.0
    %199 = vmatpush1.msra.mxu0 %v79
    %200 = vmatprep.subr.mxu0 0.0
    %201 = vmatpush1.msra.mxu0 %v80
    %202 = vmatprep.subr.mxu0 0.0
    %203 = vmatpush1.msra.mxu0 %v81
    %204 = vmatprep.subr.mxu0 0.0
    %205 = vmatpush1.msra.mxu0 %v82
    %206 = vmatprep.subr.mxu0 0.0
    %207 = vmatpush1.msra.mxu0 %v83
    %208 = vmatprep.subr.mxu0 0.0
    %209 = vmatpush1.msra.mxu0 %v84
    %210 = vmatprep.subr.mxu0 0.0
    %211 = vmatpush1.msra.mxu0 %v85
    %212 = vmatprep.subr.mxu0 0.0
    %213 = vmatpush1.msra.mxu0 %v86
    %214 = vmatprep.subr.mxu0 0.0
    %215 = vmatpush1.msra.mxu0 %v87
    %216 = vmatprep.subr.mxu0 0.0
    %217 = vmatpush1.msra.mxu0 %v88
    %218 = vmatprep.subr.mxu0 0.0
    %219 = vmatpush1.msra.mxu0 %v89
    %220 = vmatprep.subr.mxu0 0.0
    %221 = vmatpush1.msra.mxu0 %v90
    %222 = vmatprep.subr.mxu0 0.0
    %223 = vmatpush1.msra.mxu0 %v91
    %224 = vmatprep.subr.mxu0 0.0
    %225 = vmatpush1.msra.mxu0 %v92
    %226 = vmatprep.subr.mxu0 0.0
    %227 = vmatpush1.msra.mxu0 %v93
    %228 = vmatprep.subr.mxu0 0.0
    %229 = vmatpush1.msra.mxu0 %v94
    %230 = vmatprep.subr.mxu0 0.0
    %231 = vmatpush1.msra.mxu0 %v95
    %232 = vmatprep.subr.mxu0 0.0
    %233 = vmatpush1.msra.mxu0 %v96
    %234 = vmatprep.subr.mxu0 0.0
    %235 = vmatpush1.msra.mxu0 %v97
    %236 = vmatprep.subr.mxu0 0.0
    %237 = vmatpush1.msra.mxu0 %v98
    %238 = vmatprep.subr.mxu0 0.0
    %239 = vmatpush1.msra.mxu0 %v99
    %240 = vmatprep.subr.mxu0 0.0
    %241 = vmatpush1.msra.mxu0 %v100
    %242 = vmatprep.subr.mxu0 0.0
    %243 = vmatpush1.msra.mxu0 %v101
    %244 = vmatprep.subr.mxu0 0.0
    %245 = vmatpush1.msra.mxu0 %v102
    %246 = vmatprep.subr.mxu0 0.0
    %247 = vmatpush1.msra.mxu0 %v103
    %248 = vmatprep.subr.mxu0 0.0
    %249 = vmatpush1.msra.mxu0 %v104
    %250 = vmatprep.subr.mxu0 0.0
    %251 = vmatpush1.msra.mxu0 %v105
    %252 = vmatprep.subr.mxu0 0.0
    %253 = vmatpush1.msra.mxu0 %v106
    %254 = vmatprep.subr.mxu0 0.0
    %255 = vmatpush1.msra.mxu0 %v107
    %256 = vmatprep.subr.mxu0 0.0
    %257 = vmatpush1.msra.mxu0 %v108
    %258 = vmatprep.subr.mxu0 0.0
    %259 = vmatpush1.msra.mxu0 %v109
    %260 = vmatprep.subr.mxu0 0.0
    %261 = vmatpush1.msra.mxu0 %v110
    %262 = vmatprep.mubr.f32.mxu0 %v73
    %263 = vmatmul.mubr.f32.gmra.mrb[0].mxu0 %v72
    %v264 = vpop.f32.mrb[0].mxu0
    %v265 = vadd.f32 %v196, %v264
    %v266 = vpop.f32.mrb[0].mxu0
    %267 = vdwg.mxu0
    %268 = vmatprep.subr.mxu0 0.0
    %269 = vmatpush1.msra.mxu0 %v111
    %270 = vmatprep.subr.mxu0 0.0
    %271 = vmatpush1.msra.mxu0 %v112
    %272 = vmatprep.subr.mxu0 0.0
    %273 = vmatpush1.msra.mxu0 %v113
    %274 = vmatprep.subr.mxu0 0.0
    %275 = vmatpush1.msra.mxu0 %v114
    %276 = vmatprep.subr.mxu0 0.0
    %277 = vmatpush1.msra.mxu0 %v115
    %278 = vmatprep.subr.mxu0 0.0
    %279 = vmatpush1.msra.mxu0 %v116
    %280 = vmatprep.subr.mxu0 0.0
    %281 = vmatpush1.msra.mxu0 %v117
    %282 = vmatprep.subr.mxu0 0.0
    %283 = vmatpush1.msra.mxu0 %v118
    %284 = vmatprep.subr.mxu0 0.0
    %285 = vmatpush1.msra.mxu0 %v119
    %286 = vmatprep.subr.mxu0 0.0
    %287 = vmatpush1.msra.mxu0 %v120
    %288 = vmatprep.subr.mxu0 0.0
    %289 = vmatpush1.msra.mxu0 %v121
    %290 = vmatprep.subr.mxu0 0.0
    %291 = vmatpush1.msra.mxu0 %v122
    %292 = vmatprep.subr.mxu0 0.0
    %293 = vmatpush1.msra.mxu0 %v123
    %294 = vmatprep.subr.mxu0 0.0
    %295 = vmatpush1.msra.mxu0 %v124
    %296 = vmatprep.subr.mxu0 0.0
    %297 = vmatpush1.msra.mxu0 %v125
    %298 = vmatprep.subr.mxu0 0.0
    %299 = vmatpush1.msra.mxu0 %v126
    %300 = vmatprep.subr.mxu0 0.0
    %301 = vmatpush1.msra.mxu0 %v127
    %302 = vmatprep.subr.mxu0 0.0
    %303 = vmatpush1.msra.mxu0 %v128
    %304 = vmatprep.subr.mxu0 0.0
    %305 = vmatpush1.msra.mxu0 %v129
    %306 = vmatprep.subr.mxu0 0.0
    %307 = vmatpush1.msra.mxu0 %v130
    %308 = vmatprep.subr.mxu0 0.0
    %309 = vmatpush1.msra.mxu0 %v131
    %310 = vmatprep.subr.mxu0 0.0
    %311 = vmatpush1.msra.mxu0 %v132
    %312 = vmatprep.subr.mxu0 0.0
    %313 = vmatpush1.msra.mxu0 %v133
    %314 = vmatprep.subr.mxu0 0.0
    %315 = vmatpush1.msra.mxu0 %v134
    %316 = vmatprep.subr.mxu0 0.0
    %317 = vmatpush1.msra.mxu0 %v135
    %318 = vmatprep.subr.mxu0 0.0
    %319 = vmatpush1.msra.mxu0 %v136
    %320 = vmatprep.subr.mxu0 0.0
    %321 = vmatpush1.msra.mxu0 %v137
    %322 = vmatprep.subr.mxu0 0.0
    %323 = vmatpush1.msra.mxu0 %v138
    %324 = vmatprep.subr.mxu0 0.0
    %325 = vmatpush1.msra.mxu0 %v139
    %326 = vmatprep.subr.mxu0 0.0
    %327 = vmatpush1.msra.mxu0 %v140
    %328 = vmatprep.subr.mxu0 0.0
    %329 = vmatpush1.msra.mxu0 %v141
    %330 = vmatprep.subr.mxu0 0.0
    %331 = vmatpush1.msra.mxu0 %v142
    %332 = vmatprep.mubr.f32.mxu0 %v75
    %333 = vmatmul.mubr.f32.gmra.mrb[0].mxu0 %v74
    %v334 = vpop.f32.mrb[0].mxu0
    %v335 = vadd.f32 %v265, %v334
    %v336 = vpop.f32.mrb[0].mxu0
    %337 = vdwg.mxu0
    %338 = vmatprep.subr.mxu0 0.0
    %339 = vmatpush1.msra.mxu0 %v143
    %340 = vmatprep.subr.mxu0 0.0
    %341 = vmatpush1.msra.mxu0 %v144
    %342 = vmatprep.subr.mxu0 0.0
    %343 = vmatpush1.msra.mxu0 %v145
    %344 = vmatprep.subr.mxu0 0.0
    %345 = vmatpush1.msra.mxu0 %v146
    %346 = vmatprep.subr.mxu0 0.0
    %347 = vmatpush1.msra.mxu0 %v147
    %348 = vmatprep.subr.mxu0 0.0
    %349 = vmatpush1.msra.mxu0 %v148
    %350 = vmatprep.subr.mxu0 0.0
    %351 = vmatpush1.msra.mxu0 %v149
    %352 = vmatprep.subr.mxu0 0.0
    %353 = vmatpush1.msra.mxu0 %v150
    %354 = vmatprep.subr.mxu0 0.0
    %355 = vmatpush1.msra.mxu0 %v151
    %356 = vmatprep.subr.mxu0 0.0
    %357 = vmatpush1.msra.mxu0 %v152
    %358 = vmatprep.subr.mxu0 0.0
    %359 = vmatpush1.msra.mxu0 %v153
    %360 = vmatprep.subr.mxu0 0.0
    %361 = vmatpush1.msra.mxu0 %v154
    %362 = vmatprep.subr.mxu0 0.0
    %363 = vmatpush1.msra.mxu0 %v155
    %364 = vmatprep.subr.mxu0 0.0
    %365 = vmatpush1.msra.mxu0 %v156
    %366 = vmatprep.subr.mxu0 0.0
    %367 = vmatpush1.msra.mxu0 %v157
    %368 = vmatprep.subr.mxu0 0.0
    %369 = vmatpush1.msra.mxu0 %v158
    %370 = vmatprep.subr.mxu0 0.0
    %371 = vmatpush1.msra.mxu0 %v159
    %372 = vmatprep.subr.mxu0 0.0
    %373 = vmatpush1.msra.mxu0 %v160
    %374 = vmatprep.subr.mxu0 0.0
    %375 = vmatpush1.msra.mxu0 %v161
    %376 = vmatprep.subr.mxu0 0.0
    %377 = vmatpush1.msra.mxu0 %v162
    %378 = vmatprep.subr.mxu0 0.0
    %379 = vmatpush1.msra.mxu0 %v163
    %380 = vmatprep.subr.mxu0 0.0
    %381 = vmatpush1.msra.mxu0 %v164
    %382 = vmatprep.subr.mxu0 0.0
    %383 = vmatpush1.msra.mxu0 %v165
    %384 = vmatprep.subr.mxu0 0.0
    %385 = vmatpush1.msra.mxu0 %v166
    %386 = vmatprep.subr.mxu0 0.0
    %387 = vmatpush1.msra.mxu0 %v167
    %388 = vmatprep.subr.mxu0 0.0
    %389 = vmatpush1.msra.mxu0 %v168
    %390 = vmatprep.subr.mxu0 0.0
    %391 = vmatpush1.msra.mxu0 %v169
    %392 = vmatprep.subr.mxu0 0.0
    %393 = vmatpush1.msra.mxu0 %v170
    %394 = vmatprep.subr.mxu0 0.0
    %395 = vmatpush1.msra.mxu0 %v171
    %396 = vmatprep.subr.mxu0 0.0
    %397 = vmatpush1.msra.mxu0 %v172
    %398 = vmatprep.subr.mxu0 0.0
    %399 = vmatpush1.msra.mxu0 %v173
    %400 = vmatprep.subr.mxu0 0.0
    %401 = vmatpush1.msra.mxu0 %v174
    %402 = vmatprep.mubr.f32.mxu0 %v77
    %403 = vmatmul.mubr.f32.gmra.mrb[0].mxu0 %v76
    %v404 = vpop.f32.mrb[0].mxu0
    %v405 = vadd.f32 %v335, %v404
    %v406 = vpop.f32.mrb[0].mxu0
    %407 = vdwg.mxu0
    %408 = vmatprep.subr.mxu0 0.0
    %409 = vmatpush1.msra.mxu0 %v175
    %410 = vmatprep.subr.mxu0 0.0
    %411 = vmatpush1.msra.mxu0 %v176
    %412 = vmatprep.subr.mxu0 0.0
    %413 = vmatpush1.msra.mxu0 %v177
    %414 = vmatprep.subr.mxu0 0.0
    %415 = vmatpush1.msra.mxu0 %v178
    %416 = vmatprep.subr.mxu0 0.0
    %417 = vmatpush1.msra.mxu0 %v179
    %418 = vmatprep.subr.mxu0 0.0
    %419 = vmatpush1.msra.mxu0 %v180
    %420 = vmatprep.subr.mxu0 0.0
    %421 = vmatpush1.msra.mxu0 %v181
    %422 = vmatprep.subr.mxu0 0.0
    %423 = vmatpush1.msra.mxu0 %v182
    %424 = vmatprep.subr.mxu0 0.0
    %425 = vmatpush1.msra.mxu0 %v183
    %426 = vmatprep.subr.mxu0 0.0
    %427 = vmatpush1.msra.mxu0 %v184
    %428 = vmatprep.subr.mxu0 0.0
    %429 = vmatpush1.msra.mxu0 %v185
    %430 = vmatprep.subr.mxu0 0.0
    %431 = vmatpush1.msra.mxu0 %v186
    %432 = vmatprep.subr.mxu0 0.0
    %433 = vmatpush1.msra.mxu0 %v187
    %434 = vmatprep.subr.mxu0 0.0
    %435 = vmatpush1.msra.mxu0 %v188
    %436 = vmatprep.subr.mxu0 0.0
    %437 = vmatpush1.msra.mxu0 %v189
    %438 = vmatprep.subr.mxu0 0.0
    %439 = vmatpush1.msra.mxu0 %v190
    %440 = vmatprep.subr.mxu0 0.0
    %441 = vmatpush1.msra.mxu0 0.0
    %442 = vmatprep.subr.mxu0 0.0
    %443 = vmatpush1.msra.mxu0 0.0
    %444 = vmatprep.subr.mxu0 0.0
    %445 = vmatpush1.msra.mxu0 0.0
    %446 = vmatprep.subr.mxu0 0.0
    %447 = vmatpush1.msra.mxu0 0.0
    %448 = vmatprep.subr.mxu0 0.0
    %449 = vmatpush1.msra.mxu0 0.0
    %450 = vmatprep.subr.mxu0 0.0
    %451 = vmatpush1.msra.mxu0 0.0
    %452 = vmatprep.subr.mxu0 0.0
    %453 = vmatpush1.msra.mxu0 0.0
    %454 = vmatprep.subr.mxu0 0.0
    %455 = vmatpush1.msra.mxu0 0.0
    %456 = vmatprep.subr.mxu0 0.0
    %457 = vmatpush1.msra.mxu0 0.0
    %458 = vmatprep.subr.mxu0 0.0
    %459 = vmatpush1.msra.mxu0 0.0
    %460 = vmatprep.subr.mxu0 0.0
    %461 = vmatpush1.msra.mxu0 0.0
    %462 = vmatprep.subr.mxu0 0.0
    %463 = vmatpush1.msra.mxu0 0.0
    %464 = vmatprep.subr.mxu0 0.0
    %465 = vmatpush1.msra.mxu0 0.0
    %466 = vmatprep.subr.mxu0 0.0
    %467 = vmatpush1.msra.mxu0 0.0
    %468 = vmatprep.subr.mxu0 0.0
    %469 = vmatpush1.msra.mxu0 0.0
    %470 = vmatprep.subr.mxu0 0.0
    %471 = vmatpush1.msra.mxu0 0.0
    %472 = vmatprep.mubr.f32.mxu0 0.0
    %473 = vmatmul.mubr.f32.gmra.mrb[0].mxu0 %v78
    %v474 = vpop.f32.mrb[0].mxu0
    %v475 = vadd.f32 %v405, %v474
    %v476 = vpop.f32.mrb[0].mxu0
    %477 = vdwg.mxu0
    %v478 = vmax.f32 %v475, 0.0
    %v479 = vld [vmem:[%s4] sm:$0xff]
    %v480 = vld [vmem:[%s4 + $0x8] sm:$0xff]
    %v481 = vld [vmem:[%s4 + $0x10] sm:$0xff]
    %v482 = vld [vmem:[%s4 + $0x18] sm:$0xff]
    %v483 = vld [vmem:[%s4 + $0x20] sm:$0xff]
    %v484 = vld [vmem:[%s4 + $0x28] sm:$0xff]
    %v485 = vld [vmem:[%s4 + $0x30] sm:$0xff]
    %v486 = vld [vmem:[%s4 + $0x38] sm:$0xff]
    %v487 = vld [vmem:[%s4 + $0x40] sm:$0xff]
    %v488 = vld [vmem:[%s4 + $0x48] sm:$0xff]
    %v489 = vld [vmem:[%s4 + $0x50] sm:$0xff]
    %v490 = vld [vmem:[%s4 + $0x58] sm:$0xff]
    %v491 = vld [vmem:[%s4 + $0x60] sm:$0xff]
    %v492 = vld [vmem:[%s4 + $0x68] sm:$0xff]
    %v493 = vld [vmem:[%s4 + $0x70] sm:$0xff]
    %v494 = vld [vmem:[%s4 + $0x78] sm:$0xff]
    %v495 = vld [vmem:[%s5] sm:$0x1]
    %v497 = vlaneseq
    %v498 = vshrl.u32 %v497, 7
    %v499 = vsub.s32 0, %v498
    %v500 = vrot.slane %v495, %v499
    %502 = vmatprep.subr.mxu0 0.0
    %503 = vmatpush1.msra.mxu0 %v479
    %504 = vmatprep.subr.mxu0 0.0
    %505 = vmatpush1.msra.mxu0 %v480
    %506 = vmatprep.subr.mxu0 0.0
    %507 = vmatpush1.msra.mxu0 %v481
    %508 = vmatprep.subr.mxu0 0.0
    %509 = vmatpush1.msra.mxu0 %v482
    %510 = vmatprep.subr.mxu0 0.0
    %511 = vmatpush1.msra.mxu0 %v483
    %512 = vmatprep.subr.mxu0 0.0
    %513 = vmatpush1.msra.mxu0 %v484
    %514 = vmatprep.subr.mxu0 0.0
    %515 = vmatpush1.msra.mxu0 %v485
    %516 = vmatprep.subr.mxu0 0.0
    %517 = vmatpush1.msra.mxu0 %v486
    %518 = vmatprep.subr.mxu0 0.0
    %519 = vmatpush1.msra.mxu0 %v487
    %520 = vmatprep.subr.mxu0 0.0
    %521 = vmatpush1.msra.mxu0 %v488
    %522 = vmatprep.subr.mxu0 0.0
    %523 = vmatpush1.msra.mxu0 %v489
    %524 = vmatprep.subr.mxu0 0.0
    %525 = vmatpush1.msra.mxu0 %v490
    %526 = vmatprep.subr.mxu0 0.0
    %527 = vmatpush1.msra.mxu0 %v491
    %528 = vmatprep.subr.mxu0 0.0
    %529 = vmatpush1.msra.mxu0 %v492
    %530 = vmatprep.subr.mxu0 0.0
    %531 = vmatpush1.msra.mxu0 %v493
    %532 = vmatprep.subr.mxu0 0.0
    %533 = vmatpush1.msra.mxu0 %v494
    %534 = vmatprep.subr.mxu0 0.0
    %535 = vmatpush1.msra.mxu0 0.0
    %536 = vmatprep.subr.mxu0 0.0
    %537 = vmatpush1.msra.mxu0 0.0
    %538 = vmatprep.subr.mxu0 0.0
    %539 = vmatpush1.msra.mxu0 0.0
    %540 = vmatprep.subr.mxu0 0.0
    %541 = vmatpush1.msra.mxu0 0.0
    %542 = vmatprep.subr.mxu0 0.0
    %543 = vmatpush1.msra.mxu0 0.0
    %544 = vmatprep.subr.mxu0 0.0
    %545 = vmatpush1.msra.mxu0 0.0
    %546 = vmatprep.subr.mxu0 0.0
    %547 = vmatpush1.msra.mxu0 0.0
    %548 = vmatprep.subr.mxu0 0.0
    %549 = vmatpush1.msra.mxu0 0.0
    %550 = vmatprep.subr.mxu0 0.0
    %551 = vmatpush1.msra.mxu0 0.0
    %552 = vmatprep.subr.mxu0 0.0
    %553 = vmatpush1.msra.mxu0 0.0
    %554 = vmatprep.subr.mxu0 0.0
    %555 = vmatpush1.msra.mxu0 0.0
    %556 = vmatprep.subr.mxu0 0.0
    %557 = vmatpush1.msra.mxu0 0.0
    %558 = vmatprep.subr.mxu0 0.0
    %559 = vmatpush1.msra.mxu0 0.0
    %560 = vmatprep.subr.mxu0 0.0
    %561 = vmatpush1.msra.mxu0 0.0
    %562 = vmatprep.subr.mxu0 0.0
    %563 = vmatpush1.msra.mxu0 0.0
    %564 = vmatprep.subr.mxu0 0.0
    %565 = vmatpush1.msra.mxu0 0.0
    %566 = vmatprep.mubr.f32.mxu0 0.0
    %567 = vmatmul.mubr.f32.gmra.mrb[0].mxu0 %v478
    %v568 = vpop.f32.mrb[0].mxu0
    %v569 = vadd.f32 %v500, %v568
    %v570 = vpop.f32.mrb[0].mxu0
    %571 = vdwg.mxu0
    %v572 = vld [vmem:[%s6] sm:$0xff]
    %v573 = vld [vmem:[%s6 + $0x8] sm:$0xff]
    %v574 = vld [vmem:[%s6 + $0x10] sm:$0xff]
    %v575 = vld [vmem:[%s6 + $0x18] sm:$0xff]
    %v576 = vld [vmem:[%s6 + $0x20] sm:$0xff]
    %v577 = vld [vmem:[%s6 + $0x28] sm:$0xff]
    %v578 = vld [vmem:[%s6 + $0x30] sm:$0xff]
    %v579 = vld [vmem:[%s6 + $0x38] sm:$0xff]
    %v580 = vld [vmem:[%s6 + $0x40] sm:$0xff]
    %v581 = vld [vmem:[%s6 + $0x48] sm:$0xff]
    %v582 = vld [vmem:[%s6 + $0x50] sm:$0xff]
    %v583 = vld [vmem:[%s6 + $0x58] sm:$0xff]
    %v584 = vld [vmem:[%s6 + $0x60] sm:$0xff]
    %v585 = vld [vmem:[%s6 + $0x68] sm:$0xff]
    %v586 = vld [vmem:[%s6 + $0x70] sm:$0xff]
    %v587 = vld [vmem:[%s6 + $0x78] sm:$0xff]
    %v588 = vld [vmem:[%s7] sm:$0x1]
    %v590 = vlaneseq
    %v591 = vshrl.u32 %v590, 7
    %v592 = vsub.s32 0, %v591
    %v593 = vrot.slane %v588, %v592
    %595 = vmatprep.subr.mxu0 0.0
    %596 = vmatpush1.msra.mxu0 %v572
    %597 = vmatprep.subr.mxu0 0.0
    %598 = vmatpush1.msra.mxu0 %v573
    %599 = vmatprep.subr.mxu0 0.0
    %600 = vmatpush1.msra.mxu0 %v574
    %601 = vmatprep.subr.mxu0 0.0
    %602 = vmatpush1.msra.mxu0 %v575
    %603 = vmatprep.subr.mxu0 0.0
    %604 = vmatpush1.msra.mxu0 %v576
    %605 = vmatprep.subr.mxu0 0.0
    %606 = vmatpush1.msra.mxu0 %v577
    %607 = vmatprep.subr.mxu0 0.0
    %608 = vmatpush1.msra.mxu0 %v578
    %609 = vmatprep.subr.mxu0 0.0
    %610 = vmatpush1.msra.mxu0 %v579
    %611 = vmatprep.subr.mxu0 0.0
    %612 = vmatpush1.msra.mxu0 %v580
    %613 = vmatprep.subr.mxu0 0.0
    %614 = vmatpush1.msra.mxu0 %v581
    %615 = vmatprep.subr.mxu0 0.0
    %616 = vmatpush1.msra.mxu0 %v582
    %617 = vmatprep.subr.mxu0 0.0
    %618 = vmatpush1.msra.mxu0 %v583
    %619 = vmatprep.subr.mxu0 0.0
    %620 = vmatpush1.msra.mxu0 %v584
    %621 = vmatprep.subr.mxu0 0.0
    %622 = vmatpush1.msra.mxu0 %v585
    %623 = vmatprep.subr.mxu0 0.0
    %624 = vmatpush1.msra.mxu0 %v586
    %625 = vmatprep.subr.mxu0 0.0
    %626 = vmatpush1.msra.mxu0 %v587
    %627 = vmatprep.subr.mxu0 0.0
    %628 = vmatpush1.msra.mxu0 0.0
    %629 = vmatprep.subr.mxu0 0.0
    %630 = vmatpush1.msra.mxu0 0.0
    %631 = vmatprep.subr.mxu0 0.0
    %632 = vmatpush1.msra.mxu0 0.0
    %633 = vmatprep.subr.mxu0 0.0
    %634 = vmatpush1.msra.mxu0 0.0
    %635 = vmatprep.subr.mxu0 0.0
    %636 = vmatpush1.msra.mxu0 0.0
    %637 = vmatprep.subr.mxu0 0.0
    %638 = vmatpush1.msra.mxu0 0.0
    %639 = vmatprep.subr.mxu0 0.0
    %640 = vmatpush1.msra.mxu0 0.0
    %641 = vmatprep.subr.mxu0 0.0
    %642 = vmatpush1.msra.mxu0 0.0
    %643 = vmatprep.subr.mxu0 0.0
    %644 = vmatpush1.msra.mxu0 0.0
    %645 = vmatprep.subr.mxu0 0.0
    %646 = vmatpush1.msra.mxu0 0.0
    %647 = vmatprep.subr.mxu0 0.0
    %648 = vmatpush1.msra.mxu0 0.0
    %649 = vmatprep.subr.mxu0 0.0
    %650 = vmatpush1.msra.mxu0 0.0
    %651 = vmatprep.subr.mxu0 0.0
    %652 = vmatpush1.msra.mxu0 0.0
    %653 = vmatprep.subr.mxu0 0.0
    %654 = vmatpush1.msra.mxu0 0.0
    %655 = vmatprep.subr.mxu0 0.0
    %656 = vmatpush1.msra.mxu0 0.0
    %657 = vmatprep.subr.mxu0 0.0
    %658 = vmatpush1.msra.mxu0 0.0
    %659 = vmatprep.mubr.f32.mxu0 0.0
    %660 = vmatmul.mubr.f32.gmra.mrb[0].mxu0 %v569
    %v661 = vpop.f32.mrb[0].mxu0
    %v662 = vadd.f32 %v593, %v661
    %v663 = vpop.f32.mrb[0].mxu0
    %664 = vdwg.mxu0
    %v665 = vld [vmem:[%s1] sm:$0xff]
    %v666 = vld [vmem:[%s1 + $0x8] sm:$0xff]
    %v667 = vld [vmem:[%s8] sm:$0xff]
    %v668 = vld [vmem:[%s8 + $0x8] sm:$0xff]
    %v669 = vld [vmem:[%s8 + $0x10] sm:$0xff]
    %v670 = vld [vmem:[%s8 + $0x18] sm:$0xff]
    %v671 = vld [vmem:[%s8 + $0x20] sm:$0xff]
    %v672 = vld [vmem:[%s8 + $0x28] sm:$0xff]
    %v673 = vld [vmem:[%s8 + $0x30] sm:$0xff]
    %v674 = vld [vmem:[%s8 + $0x38] sm:$0xff]
    %v675 = vld [vmem:[%s8 + $0x40] sm:$0xff]
    %v676 = vld [vmem:[%s8 + $0x48] sm:$0xff]
    %v677 = vld [vmem:[%s8 + $0x50] sm:$0xff]
    %v678 = vld [vmem:[%s8 + $0x58] sm:$0xff]
    %v679 = vld [vmem:[%s8 + $0x60] sm:$0xff]
    %v680 = vld [vmem:[%s8 + $0x68] sm:$0xff]
    %v681 = vld [vmem:[%s8 + $0x70] sm:$0xff]
    %v682 = vld [vmem:[%s8 + $0x78] sm:$0xff]
    %v683 = vld [vmem:[%s9] sm:$0x1]
    %v685 = vlaneseq
    %v686 = vshrl.u32 %v685, 7
    %v687 = vsub.s32 0, %v686
    %v688 = vrot.slane %v683, %v687
    %690 = vmatprep.subr.mxu0 0.0
    %691 = vmatpush1.msra.mxu0 %v667
    %692 = vmatprep.subr.mxu0 0.0
    %693 = vmatpush1.msra.mxu0 %v668
    %694 = vmatprep.subr.mxu0 0.0
    %695 = vmatpush1.msra.mxu0 %v669
    %696 = vmatprep.subr.mxu0 0.0
    %697 = vmatpush1.msra.mxu0 %v670
    %698 = vmatprep.subr.mxu0 0.0
    %699 = vmatpush1.msra.mxu0 %v671
    %700 = vmatprep.subr.mxu0 0.0
    %701 = vmatpush1.msra.mxu0 %v672
    %702 = vmatprep.subr.mxu0 0.0
    %703 = vmatpush1.msra.mxu0 %v673
    %704 = vmatprep.subr.mxu0 0.0
    %705 = vmatpush1.msra.mxu0 %v674
    %706 = vmatprep.subr.mxu0 0.0
    %707 = vmatpush1.msra.mxu0 %v675
    %708 = vmatprep.subr.mxu0 0.0
    %709 = vmatpush1.msra.mxu0 %v676
    %710 = vmatprep.subr.mxu0 0.0
    %711 = vmatpush1.msra.mxu0 %v677
    %712 = vmatprep.subr.mxu0 0.0
    %713 = vmatpush1.msra.mxu0 %v678
    %714 = vmatprep.subr.mxu0 0.0
    %715 = vmatpush1.msra.mxu0 %v679
    %716 = vmatprep.subr.mxu0 0.0
    %717 = vmatpush1.msra.mxu0 %v680
    %718 = vmatprep.subr.mxu0 0.0
    %719 = vmatpush1.msra.mxu0 %v681
    %720 = vmatprep.subr.mxu0 0.0
    %721 = vmatpush1.msra.mxu0 %v682
    %722 = vmatprep.subr.mxu0 0.0
    %723 = vmatpush1.msra.mxu0 0.0
    %724 = vmatprep.subr.mxu0 0.0
    %725 = vmatpush1.msra.mxu0 0.0
    %726 = vmatprep.subr.mxu0 0.0
    %727 = vmatpush1.msra.mxu0 0.0
    %728 = vmatprep.subr.mxu0 0.0
    %729 = vmatpush1.msra.mxu0 0.0
    %730 = vmatprep.subr.mxu0 0.0
    %731 = vmatpush1.msra.mxu0 0.0
    %732 = vmatprep.subr.mxu0 0.0
    %733 = vmatpush1.msra.mxu0 0.0
    %734 = vmatprep.subr.mxu0 0.0
    %735 = vmatpush1.msra.mxu0 0.0
    %736 = vmatprep.subr.mxu0 0.0
    %737 = vmatpush1.msra.mxu0 0.0
    %738 = vmatprep.subr.mxu0 0.0
    %739 = vmatpush1.msra.mxu0 0.0
    %740 = vmatprep.subr.mxu0 0.0
    %741 = vmatpush1.msra.mxu0 0.0
    %742 = vmatprep.subr.mxu0 0.0
    %743 = vmatpush1.msra.mxu0 0.0
    %744 = vmatprep.subr.mxu0 0.0
    %745 = vmatpush1.msra.mxu0 0.0
    %746 = vmatprep.subr.mxu0 0.0
    %747 = vmatpush1.msra.mxu0 0.0
    %748 = vmatprep.subr.mxu0 0.0
    %749 = vmatpush1.msra.mxu0 0.0
    %750 = vmatprep.subr.mxu0 0.0
    %751 = vmatpush1.msra.mxu0 0.0
    %752 = vmatprep.subr.mxu0 0.0
    %753 = vmatpush1.msra.mxu0 0.0
    %754 = vmatprep.mubr.f32.mxu0 0.0
    %755 = vmatmul.mubr.f32.gmra.mrb[0].mxu0 %v665
    %v756 = vpop.f32.mrb[0].mxu0
    %v757 = vadd.f32 %v688, %v756
    %v758 = vpop.f32.mrb[0].mxu0
    %759 = vmatprep.mubr.f32.mxu0 0.0
    %760 = vmatmul.mubr.f32.gmra.mrb[0].mxu0 %v666
    %v761 = vpop.f32.mrb[0].mxu0
    %v762 = vadd.f32 %v688, %v761
    %v763 = vpop.f32.mrb[0].mxu0
    %764 = vdwg.mxu0
    %v765 = vmax.f32 %v757, 0.0
    %v766 = vmax.f32 %v762, 0.0
    %v767 = vld [vmem:[%s10] sm:$0xff]
    %v768 = vld [vmem:[%s10 + $0x8] sm:$0xff]
    %v769 = vld [vmem:[%s10 + $0x10] sm:$0xff]
    %v770 = vld [vmem:[%s10 + $0x18] sm:$0xff]
    %v771 = vld [vmem:[%s10 + $0x20] sm:$0xff]
    %v772 = vld [vmem:[%s10 + $0x28] sm:$0xff]
    %v773 = vld [vmem:[%s10 + $0x30] sm:$0xff]
    %v774 = vld [vmem:[%s10 + $0x38] sm:$0xff]
    %v775 = vld [vmem:[%s10 + $0x40] sm:$0xff]
    %v776 = vld [vmem:[%s10 + $0x48] sm:$0xff]
    %v777 = vld [vmem:[%s10 + $0x50] sm:$0xff]
    %v778 = vld [vmem:[%s10 + $0x58] sm:$0xff]
    %v779 = vld [vmem:[%s10 + $0x60] sm:$0xff]
    %v780 = vld [vmem:[%s10 + $0x68] sm:$0xff]
    %v781 = vld [vmem:[%s10 + $0x70] sm:$0xff]
    %v782 = vld [vmem:[%s10 + $0x78] sm:$0xff]
    %v783 = vld [vmem:[%s11] sm:$0x1]
    %v785 = vlaneseq
    %v786 = vshrl.u32 %v785, 7
    %v787 = vsub.s32 0, %v786
    %v788 = vrot.slane %v783, %v787
    %790 = vmatprep.subr.mxu0 0.0
    %791 = vmatpush1.msra.mxu0 %v767
    %792 = vmatprep.subr.mxu0 0.0
    %793 = vmatpush1.msra.mxu0 %v768
    %794 = vmatprep.subr.mxu0 0.0
    %795 = vmatpush1.msra.mxu0 %v769
    %796 = vmatprep.subr.mxu0 0.0
    %797 = vmatpush1.msra.mxu0 %v770
    %798 = vmatprep.subr.mxu0 0.0
    %799 = vmatpush1.msra.mxu0 %v771
    %800 = vmatprep.subr.mxu0 0.0
    %801 = vmatpush1.msra.mxu0 %v772
    %802 = vmatprep.subr.mxu0 0.0
    %803 = vmatpush1.msra.mxu0 %v773
    %804 = vmatprep.subr.mxu0 0.0
    %805 = vmatpush1.msra.mxu0 %v774
    %806 = vmatprep.subr.mxu0 0.0
    %807 = vmatpush1.msra.mxu0 %v775
    %808 = vmatprep.subr.mxu0 0.0
    %809 = vmatpush1.msra.mxu0 %v776
    %810 = vmatprep.subr.mxu0 0.0
    %811 = vmatpush1.msra.mxu0 %v777
    %812 = vmatprep.subr.mxu0 0.0
    %813 = vmatpush1.msra.mxu0 %v778
    %814 = vmatprep.subr.mxu0 0.0
    %815 = vmatpush1.msra.mxu0 %v779
    %816 = vmatprep.subr.mxu0 0.0
    %817 = vmatpush1.msra.mxu0 %v780
    %818 = vmatprep.subr.mxu0 0.0
    %819 = vmatpush1.msra.mxu0 %v781
    %820 = vmatprep.subr.mxu0 0.0
    %821 = vmatpush1.msra.mxu0 %v782
    %822 = vmatprep.subr.mxu0 0.0
    %823 = vmatpush1.msra.mxu0 0.0
    %824 = vmatprep.subr.mxu0 0.0
    %825 = vmatpush1.msra.mxu0 0.0
    %826 = vmatprep.subr.mxu0 0.0
    %827 = vmatpush1.msra.mxu0 0.0
    %828 = vmatprep.subr.mxu0 0.0
    %829 = vmatpush1.msra.mxu0 0.0
    %830 = vmatprep.subr.mxu0 0.0
    %831 = vmatpush1.msra.mxu0 0.0
    %832 = vmatprep.subr.mxu0 0.0
    %833 = vmatpush1.msra.mxu0 0.0
    %834 = vmatprep.subr.mxu0 0.0
    %835 = vmatpush1.msra.mxu0 0.0
    %836 = vmatprep.subr.mxu0 0.0
    %837 = vmatpush1.msra.mxu0 0.0
    %838 = vmatprep.subr.mxu0 0.0
    %839 = vmatpush1.msra.mxu0 0.0
    %840 = vmatprep.subr.mxu0 0.0
    %841 = vmatpush1.msra.mxu0 0.0
    %842 = vmatprep.subr.mxu0 0.0
    %843 = vmatpush1.msra.mxu0 0.0
    %844 = vmatprep.subr.mxu0 0.0
    %845 = vmatpush1.msra.mxu0 0.0
    %846 = vmatprep.subr.mxu0 0.0
    %847 = vmatpush1.msra.mxu0 0.0
    %848 = vmatprep.subr.mxu0 0.0
    %849 = vmatpush1.msra.mxu0 0.0
    %850 = vmatprep.subr.mxu0 0.0
    %851 = vmatpush1.msra.mxu0 0.0
    %852 = vmatprep.subr.mxu0 0.0
    %853 = vmatpush1.msra.mxu0 0.0
    %854 = vmatprep.mubr.f32.mxu0 0.0
    %855 = vmatmul.mubr.f32.gmra.mrb[0].mxu0 %v765
    %v856 = vpop.f32.mrb[0].mxu0
    %v857 = vadd.f32 %v788, %v856
    %v858 = vpop.f32.mrb[0].mxu0
    %859 = vmatprep.mubr.f32.mxu0 0.0
    %860 = vmatmul.mubr.f32.gmra.mrb[0].mxu0 %v766
    %v861 = vpop.f32.mrb[0].mxu0
    %v862 = vadd.f32 %v788, %v861
    %v863 = vpop.f32.mrb[0].mxu0
    %864 = vdwg.mxu0
    %v865 = vld [vmem:[#allocation4] sm:$0xff]
    %v866 = vld [vmem:[#allocation4 + $0x8] sm:$0xff]
    %v867 = vld [vmem:[#allocation4 + $0x10] sm:$0xff]
    %v868 = vld [vmem:[#allocation4 + $0x18] sm:$0xff]
    %v869 = vld [vmem:[#allocation4 + $0x20] sm:$0xff]
    %v870 = vld [vmem:[#allocation4 + $0x28] sm:$0xff]
    %v871 = vld [vmem:[#allocation4 + $0x30] sm:$0xff]
    %v872 = vld [vmem:[#allocation4 + $0x38] sm:$0xff]
    %v873 = vld [vmem:[#allocation4 + $0x40] sm:$0xff]
    %v874 = vld [vmem:[#allocation4 + $0x48] sm:$0xff]
    %v875 = vld [vmem:[#allocation4 + $0x50] sm:$0xff]
    %v876 = vld [vmem:[#allocation4 + $0x58] sm:$0xff]
    %v877 = vld [vmem:[#allocation4 + $0x60] sm:$0xff]
    %v878 = vld [vmem:[#allocation4 + $0x68] sm:$0xff]
    %v879 = vld [vmem:[#allocation4 + $0x70] sm:$0xff]
    %v880 = vld [vmem:[#allocation4 + $0x78] sm:$0xff]
    %v881 = vlaneseq
    %v882 = vshrl.u32 %v881, 7
    %v883 = vsub.s32 0, %v882
    %v884 = vrot.slane %v662, %v883
    %v885 = vlaneseq
    %v886 = vshrl.u32 %v885, 7
    %v887 = vsub.s32 1, %v886
    %v888 = vrot.slane %v662, %v887
    %889 = vmatprep.subr.mxu0 0.0
    %890 = vmatpush1.msra.mxu0 %v865
    %891 = vmatprep.subr.mxu0 0.0
    %892 = vmatpush1.msra.mxu0 %v866
    %893 = vmatprep.subr.mxu0 0.0
    %894 = vmatpush1.msra.mxu0 %v867
    %895 = vmatprep.subr.mxu0 0.0
    %896 = vmatpush1.msra.mxu0 %v868
    %897 = vmatprep.subr.mxu0 0.0
    %898 = vmatpush1.msra.mxu0 %v869
    %899 = vmatprep.subr.mxu0 0.0
    %900 = vmatpush1.msra.mxu0 %v870
    %901 = vmatprep.subr.mxu0 0.0
    %902 = vmatpush1.msra.mxu0 %v871
    %903 = vmatprep.subr.mxu0 0.0
    %904 = vmatpush1.msra.mxu0 %v872
    %905 = vmatprep.subr.mxu0 0.0
    %906 = vmatpush1.msra.mxu0 %v873
    %907 = vmatprep.subr.mxu0 0.0
    %908 = vmatpush1.msra.mxu0 %v874
    %909 = vmatprep.subr.mxu0 0.0
    %910 = vmatpush1.msra.mxu0 %v875
    %911 = vmatprep.subr.mxu0 0.0
    %912 = vmatpush1.msra.mxu0 %v876
    %913 = vmatprep.subr.mxu0 0.0
    %914 = vmatpush1.msra.mxu0 %v877
    %915 = vmatprep.subr.mxu0 0.0
    %916 = vmatpush1.msra.mxu0 %v878
    %917 = vmatprep.subr.mxu0 0.0
    %918 = vmatpush1.msra.mxu0 %v879
    %919 = vmatprep.subr.mxu0 0.0
    %920 = vmatpush1.msra.mxu0 %v880
    %921 = vmatprep.subr.mxu0 0.0
    %922 = vmatpush1.msra.mxu0 0.0
    %923 = vmatprep.subr.mxu0 0.0
    %924 = vmatpush1.msra.mxu0 0.0
    %925 = vmatprep.subr.mxu0 0.0
    %926 = vmatpush1.msra.mxu0 0.0
    %927 = vmatprep.subr.mxu0 0.0
    %928 = vmatpush1.msra.mxu0 0.0
    %929 = vmatprep.subr.mxu0 0.0
    %930 = vmatpush1.msra.mxu0 0.0
    %931 = vmatprep.subr.mxu0 0.0
    %932 = vmatpush1.msra.mxu0 0.0
    %933 = vmatprep.subr.mxu0 0.0
    %934 = vmatpush1.msra.mxu0 0.0
    %935 = vmatprep.subr.mxu0 0.0
    %936 = vmatpush1.msra.mxu0 0.0
    %937 = vmatprep.subr.mxu0 0.0
    %938 = vmatpush1.msra.mxu0 0.0
    %939 = vmatprep.subr.mxu0 0.0
    %940 = vmatpush1.msra.mxu0 0.0
    %941 = vmatprep.subr.mxu0 0.0
    %942 = vmatpush1.msra.mxu0 0.0
    %943 = vmatprep.subr.mxu0 0.0
    %944 = vmatpush1.msra.mxu0 0.0
    %945 = vmatprep.subr.mxu0 0.0
    %946 = vmatpush1.msra.mxu0 0.0
    %947 = vmatprep.subr.mxu0 0.0
    %948 = vmatpush1.msra.mxu0 0.0
    %949 = vmatprep.subr.mxu0 0.0
    %950 = vmatpush1.msra.mxu0 0.0
    %951 = vmatprep.subr.mxu0 0.0
    %952 = vmatpush1.msra.mxu0 0.0
    %953 = vmatprep.mubr.f32.mxu0 0.0
    %954 = vmatmul.mubr.f32.gmra.mrb[0].mxu0 %v857
    %v955 = vpop.f32.mrb[0].mxu0
    %v956 = vadd.f32 %v884, %v955
    %v957 = vpop.f32.mrb[0].mxu0
    %958 = vmatprep.mubr.f32.mxu0 0.0
    %959 = vmatmul.mubr.f32.gmra.mrb[0].mxu0 %v862
    %v960 = vpop.f32.mrb[0].mxu0
    %v961 = vadd.f32 %v888, %v960
    %v962 = vpop.f32.mrb[0].mxu0
    %963 = vdwg.mxu0
    %964 = vst [vmem:[%s13] sm:$0xff] %v956
    %965 = vst [vmem:[%s13 + $0x8] sm:$0xff] %v961
    // Predicated region
    $region62: #{tcn_dynamic_forward.1} parent=1 // pred_check
      _
    $region63: #{tcn_dynamic_forward.1} parent=1 // pred_check_branch
      %967 = sbr.rel (0) target = $region65
    $region64: #{tcn_dynamic_forward.1} parent=1 // pred_region
      _
    $region65: #{tcn_dynamic_forward.1} parent=1 // pred_fallthru
      _
    // Predicated region
    $region66: #{tcn_dynamic_forward.1} parent=1 // pred_check
      _
    $region67: #{tcn_dynamic_forward.1} parent=1 // pred_check_branch
      %969 = sbr.rel (0) target = $region69
    $region68: #{tcn_dynamic_forward.1} parent=1 // pred_region
      _
    $region69: #{tcn_dynamic_forward.1} parent=1 // pred_fallthru
      _
    %970 = vsyncpa [#allocation3], 1
    %971 = vsyncpa [#allocation5], 1

</llo_original>
